<compile_context>
chip_gen: v7x
topology: tpu7x:2x2x1
jax: 0.10.0
libtpu: 0.0.40
codegen_flags: <defaults>
</compile_context>

<pallas_src>
import numpy as np
import jax
import jax.numpy as jnp
from jax import lax
from jax.experimental import pallas as pl
from jax.experimental.pallas import tpu as pltpu


def _build_conv_matrix(wconv, H, W, HWp):
    """Dense (2*HWp, HWp) matrix so the 7x7, 2->1 channel conv (padding=3) becomes
    logits = [avg | max] @ M. Shifts and zero-padding boundaries are baked in."""
    oh, ow = np.meshgrid(np.arange(H), np.arange(W), indexing="ij")
    out_idx = (oh * W + ow).ravel()
    rows, cols, taps = [], [], []
    for c in range(2):
        for kh in range(7):
            for kw in range(7):
                ih, iw = oh + kh - 3, ow + kw - 3
                valid = ((ih >= 0) & (ih < H) & (iw >= 0) & (iw < W)).ravel()
                in_idx = (ih * W + iw).ravel()
                rows.append(c * HWp + in_idx[valid])
                cols.append(out_idx[valid])
                taps.append(np.full(int(valid.sum()), c * 49 + kh * 7 + kw, np.int32))
    rows = np.concatenate(rows)
    cols = np.concatenate(cols)
    taps = np.concatenate(taps)
    vals = wconv.reshape(-1).astype(jnp.float32)[taps]
    return jnp.zeros((2 * HWp, HWp), jnp.float32).at[rows, cols].add(vals)


def _make_cbam_kernel(C, H, W, HWp, c_chunk, use_matmul_conv):
    HW = H * W
    inv_hw = 1.0 / HW
    inv_c = 1.0 / C
    n_chunks = C // c_chunk
    R = 3  # 7x7 conv -> padding 3

    def kernel(x_ref, w1_ref, b1_ref, w2_ref, b2_ref, conv_ref, bc_ref, out_ref):
        x = x_ref[...].astype(jnp.float32)                       # (Bb, C, HWp), HWp on lanes

        # ---- channel attention: GAP -> fc1 -> relu -> fc2 -> sigmoid (batched over Bb)
        gap = jnp.sum(x, axis=2) * inv_hw                        # (Bb, C); padded lanes are zero
        h = jnp.maximum(
            jnp.dot(gap, w1_ref[...], preferred_element_type=jnp.float32) + b1_ref[...], 0.0)
        cw = jax.nn.sigmoid(
            jnp.dot(h, w2_ref[...], preferred_element_type=jnp.float32) + b2_ref[...])  # (Bb, C)

        # ---- spatial attention: [mean_C | max_C] -> 7x7 conv -> sigmoid
        avg_m = jnp.sum(x, axis=1) * inv_c                       # (Bb, HWp)
        max_m = jnp.max(x, axis=1)                               # (Bb, HWp)
        maps = jnp.concatenate([avg_m, max_m], axis=1)           # (Bb, 2*HWp), 128-aligned concat

        if use_matmul_conv:
            # One MXU matmul replaces 49 XLU rolls + per-tap VPU mask math.
            logits = (jnp.dot(maps, conv_ref[...], preferred_element_type=jnp.float32)
                      + bc_ref[0, 0])                            # (Bb, HWp)
        else:
            # Roll-based fallback for very large maps (coefficient matrix would not fit VMEM).
            lane = lax.broadcasted_iota(jnp.int32, (1, 2 * HWp), 1)
            pix = lane % HWp
            ww = pix % W
            hh = pix // W
            is_max = lane >= HWp
            hmask = [jnp.logical_and(hh + d >= 0, hh + d < H) for d in range(-R, R + 1)]
            wmask = [jnp.logical_and(ww + d >= 0, ww + d < W) for d in range(-R, R + 1)]
            acc = jnp.zeros_like(maps)
            for kh in range(2 * R + 1):
                for kw in range(2 * R + 1):
                    k = kh * (2 * R + 1) + kw
                    t = (kh - R) * W + (kw - R)                  # flattened input offset
                    # Boundary mask folded into the coefficient: acc += c_k * shifted.
                    coef = jnp.where(is_max, conv_ref[1, k], conv_ref[0, k])
                    c_k = jnp.where(jnp.logical_and(hmask[kh], wmask[kw]), coef, 0.0)
                    shifted = maps if t == 0 else pltpu.roll(maps, shift=(-t) % (2 * HWp), axis=1)
                    acc = acc + c_k * shifted
            logits = acc[:, :HWp] + acc[:, HWp:] + bc_ref[0, 0]  # fold the 2 conv in-channels

        sw = jax.nn.sigmoid(logits)                              # (Bb, HWp)

        # ---- fused epilogue: out = x * (1 + cw + sw).  Re-read x_ref per C-chunk so the
        # full-size broadcast temp and the upcast slab are never live at the same time.
        if n_chunks == 1:
            out_ref[...] = (x * (1.0 + cw[:, :, None] + sw[:, None, :])).astype(out_ref.dtype)
        else:
            def body(ci, carry):
                off = pl.multiple_of(ci * c_chunk, c_chunk)
                xc = x_ref[:, pl.ds(off, c_chunk), :].astype(jnp.float32)
                cwc = lax.dynamic_slice_in_dim(cw, off, c_chunk, axis=1)
                out_ref[:, pl.ds(off, c_chunk), :] = (
                    xc * (1.0 + cwc[:, :, None] + sw[:, None, :])).astype(out_ref.dtype)
                return carry
            lax.fori_loop(0, n_chunks, body, 0)

    return kernel


def cbam_pallas(x_nchw, params, *, block_batch=None):
    """CBAM forward. x_nchw: (B, C, H, W).
    params = (w1, b1, w2, b2, wconv, bconv); fc weights pre-transposed (y = x @ w + b),
    wconv: (1, 2, 7, 7), bconv: (1,)."""
    w1, b1, w2, b2, wconv, bconv = params
    B, C, H, W = x_nchw.shape
    Cr = w1.shape[1]
    HW = H * W
    HWp = ((HW + 127) // 128) * 128                 # lane-pad: all slices/stores stay 128-aligned

    # NCHW -> (B, C, H*W): pure reshape (no transpose); pad lanes only if needed.
    x3 = x_nchw.reshape(B, C, HW)
    if HWp != HW:
        x3 = jnp.pad(x3, ((0, 0), (0, 0), (0, HWp - HW)))

    itemsize = jnp.dtype(x3.dtype).itemsize
    in_bytes = C * HWp * itemsize

    # Spatial conv as one MXU matmul when the (2*HWp, HWp) matrix is small; roll fallback otherwise.
    use_matmul_conv = 2 * HWp * HWp * 4 <= (6 << 20)
    if use_matmul_conv:
        conv_operand = _build_conv_matrix(wconv, H, W, HWp)       # (2*HWp, HWp) f32
        conv_spec = pl.BlockSpec((2 * HWp, HWp), lambda i: (0, 0))
    else:
        conv_operand = wconv.reshape(2, 49).astype(jnp.float32)   # scalar taps in SMEM
        conv_spec = pl.BlockSpec(memory_space=pltpu.MemorySpace.SMEM)

    # ---- per-generation VMEM budgeting (v5e/v6e: 128 MiB physical, v7x: 64 MiB per TC).
    try:
        phys_vmem = int(pltpu.get_tpu_info().vmem_capacity_bytes)
    except Exception:
        phys_vmem = 64 << 20                         # conservative default (v7x per-TC)
    vmem_limit = int(min(phys_vmem * 3 // 4, 96 << 20))

    fixed = (2 * int(conv_operand.size) * 4 if use_matmul_conv else 0) \
            + 2 * (C * Cr + Cr + Cr * C + C) * 4
    # 2x in + 2x out double buffers + one f32 working copy of the slab (kernel temporaries).
    per_b = 4 * in_bytes + C * HWp * 4
    cap_vmem = max(1, (vmem_limit - fixed - (4 << 20)) // per_b)
    cap_dma = max(1, (8 << 20) // in_bytes)          # beyond ~8 MiB slabs: no further HBM-roofline win
    cap = int(min(cap_vmem, cap_dma))
    # TODO(synk): if even a single-batch (C, HWp) slab exceeds the VMEM budget, split C over a
    # second "arbitrary" grid axis with scratch accumulators instead of relying on block_batch=1.

    if block_batch is None:
        divs = [d for d in range(1, B + 1) if B % d == 0 and d <= cap]
        if B >= 2:                                   # keep >= 2 grid steps so v7x megacore splits the batch
            divs = [d for d in divs if d <= B // 2] or [1]
        mult8 = [d for d in divs if d % 8 == 0]      # full 8-sublane vregs for the (Bb, 2*HWp) maps
        block_batch = max(mult8) if mult8 else max(divs)
    block_batch = max(1, min(int(block_batch), B))
    while B % block_batch:
        block_batch -= 1

    # Epilogue channel-chunk: keep the per-chunk (Bb, c_chunk, HWp) f32 temp around ~2 MiB.
    c_limit = max(1, (2 << 20) // max(1, block_batch * HWp * 4))
    c_chunk = C
    if c_limit < C:
        c_chunk = max(d for d in range(1, C + 1) if C % d == 0 and d <= c_limit)

    b1_2d = b1.reshape(1, Cr).astype(jnp.float32)
    b2_2d = b2.reshape(1, C).astype(jnp.float32)
    bc = bconv.reshape(1, 1).astype(jnp.float32)

    kernel = _make_cbam_kernel(C, H, W, HWp, c_chunk, use_matmul_conv)

    grid_spec = pltpu.PrefetchScalarGridSpec(
        num_scalar_prefetch=0,
        grid=(B // block_batch,),
        in_specs=[
            pl.BlockSpec((block_batch, C, HWp), lambda i: (i, 0, 0)),   # x slab (lane-dense)
            pl.BlockSpec((C, Cr), lambda i: (0, 0)),                    # fc1 weight (C, Cr)
            pl.BlockSpec((1, Cr), lambda i: (0, 0)),                    # fc1 bias
            pl.BlockSpec((Cr, C), lambda i: (0, 0)),                    # fc2 weight (Cr, C)
            pl.BlockSpec((1, C), lambda i: (0, 0)),                     # fc2 bias
            conv_spec,                                                  # conv matrix (VMEM) or taps (SMEM)
            pl.BlockSpec(memory_space=pltpu.MemorySpace.SMEM),          # conv bias (1, 1)
        ],
        out_specs=pl.BlockSpec((block_batch, C, HWp), lambda i: (i, 0, 0)),
    )

    out3 = pl.pallas_call(
        kernel,
        out_shape=jax.ShapeDtypeStruct((B, C, HWp), x3.dtype),
        grid_spec=grid_spec,
        compiler_params=pltpu.CompilerParams(
            dimension_semantics=("parallel",),        # independent batch blocks -> megacore sharding
            vmem_limit_bytes=vmem_limit),
    )(x3, w1.astype(jnp.float32), b1_2d, w2.astype(jnp.float32), b2_2d, conv_operand, bc)

    if HWp != HW:
        out3 = out3[:, :, :HW]
    return out3.reshape(B, C, H, W)


def cbam_ref(x, w1, b1, w2, b2, wconv, bconv):
    """Pure-JAX reference matching the PyTorch forward (NCHW)."""
    avg = jnp.mean(x, axis=(2, 3))                                   # (B, C)
    y = jnp.maximum(avg @ w1 + b1, 0.0)
    cw = jax.nn.sigmoid(y @ w2 + b2)[:, :, None, None]               # (B, C, 1, 1)

    avg_map = jnp.mean(x, axis=1, keepdims=True)
    max_map = jnp.max(x, axis=1, keepdims=True)
    cat = jnp.concatenate([avg_map, max_map], axis=1)                # (B, 2, H, W)
    conv = lax.conv_general_dilated(
        cat, wconv, window_strides=(1, 1), padding=[(3, 3), (3, 3)],
        dimension_numbers=("NCHW", "OIHW", "NCHW"))
    sw = jax.nn.sigmoid(conv + bconv.reshape(1, 1, 1, 1))            # (B, 1, H, W)
    return x * cw + x * sw + x


if __name__ == "__main__":
    # Small shapes consistent with the module (reduction_ratio=16 needs C >= 16).
    B, C, H, W = 2, 32, 16, 16
    Cr = C // 16

    key = jax.random.PRNGKey(0)
    ks = jax.random.split(key, 7)
    x = jax.random.normal(ks[0], (B, C, H, W), jnp.float32)
    # Synthetic parameters (fc weights stored pre-transposed: y = x @ W + b).
    w1 = jax.random.normal(ks[1], (C, Cr), jnp.float32) * 0.2
    b1 = jax.random.normal(ks[2], (Cr,), jnp.float32) * 0.1
    w2 = jax.random.normal(ks[3], (Cr, C), jnp.float32) * 0.2
    b2 = jax.random.normal(ks[4], (C,), jnp.float32) * 0.1
    wconv = jax.random.normal(ks[5], (1, 2, 7, 7), jnp.float32) * 0.1
    bconv = jax.random.normal(ks[6], (1,), jnp.float32) * 0.1

    out = cbam_pallas(x, (w1, b1, w2, b2, wconv, bconv))
    out = jax.block_until_ready(out)

    ref = cbam_ref(x, w1, b1, w2, b2, wconv, bconv)
    err = float(jnp.max(jnp.abs(out - ref)))
    assert out.shape == (B, C, H, W) and out.dtype == jnp.float32
    assert jnp.allclose(out, ref, atol=1e-3, rtol=1e-3), f"max abs err {err}"
    print("KERNEL_OK")
</pallas_src>

<mosaic_0001>
module attributes {stable_mosaic.version = 11 : i64} {
  func.func @kernel(%arg0: i32, %arg1: memref<1x32x256xf32, #tpu.memory_space<vmem>>, %arg2: memref<32x2xf32, #tpu.memory_space<vmem>>, %arg3: memref<1x2xf32, #tpu.memory_space<vmem>>, %arg4: memref<2x32xf32, #tpu.memory_space<vmem>>, %arg5: memref<1x32xf32, #tpu.memory_space<vmem>>, %arg6: memref<512x256xf32, #tpu.memory_space<vmem>>, %arg7: memref<1x1xf32, #tpu.memory_space<smem>>, %arg8: memref<1x32x256xf32, #tpu.memory_space<vmem>>) attributes {dimension_semantics = [#tpu.dimension_semantics<parallel>], iteration_bounds = array<i64: 2>, scalar_prefetch = 0 : i64, scratch_operands = 0 : i64, tpu.core_type = #tpu.core_type<tc>, window_params = [{transform_indices = @transform_0, window_bounds = array<i64: 1, 32, 256>}, {pipeline_mode = #tpu.pipeline_mode<synchronous>, transform_indices = @transform_1, window_bounds = array<i64: 32, 2>}, {pipeline_mode = #tpu.pipeline_mode<synchronous>, transform_indices = @transform_2, window_bounds = array<i64: 1, 2>}, {pipeline_mode = #tpu.pipeline_mode<synchronous>, transform_indices = @transform_3, window_bounds = array<i64: 2, 32>}, {pipeline_mode = #tpu.pipeline_mode<synchronous>, transform_indices = @transform_4, window_bounds = array<i64: 1, 32>}, {pipeline_mode = #tpu.pipeline_mode<synchronous>, transform_indices = @transform_5, window_bounds = array<i64: 512, 256>}, {transform_indices = @transform_6, window_bounds = array<i64: 1, 1>}, {transform_indices = @transform_7, window_bounds = array<i64: 1, 32, 256>}]} {
    %c0 = arith.constant 0 : index
    %c0_0 = arith.constant 0 : index
    %c0_1 = arith.constant 0 : index
    %0 = vector.load %arg1[%c0, %c0_0, %c0_1] : memref<1x32x256xf32, #tpu.memory_space<vmem>>, vector<1x32x256xf32>
    %cst = arith.constant dense<0.000000e+00> : vector<1x32xf32>
    %1 = vector.multi_reduction <add>, %0, %cst [2] : vector<1x32x256xf32> to vector<1x32xf32>
    %cst_2 = arith.constant 3.906250e-03 : f32
    %2 = vector.broadcast %cst_2 : f32 to vector<1x32xf32>
    %3 = arith.mulf %1, %2 : vector<1x32xf32>
    %c0_3 = arith.constant 0 : index
    %c0_4 = arith.constant 0 : index
    %4 = vector.load %arg2[%c0_3, %c0_4] : memref<32x2xf32, #tpu.memory_space<vmem>>, vector<32x2xf32>
    %cst_5 = arith.constant dense<0.000000e+00> : vector<1x2xf32>
    %5 = tpu.matmul %3, %4, %cst_5 {dimension_numbers = #tpu.dot_dimension_numbers<[1], [0], [0], [1], [0, 0, 1, 1], [], []>} : vector<1x32xf32>, vector<32x2xf32>, vector<1x2xf32> -> vector<1x2xf32>
    %c0_6 = arith.constant 0 : index
    %c0_7 = arith.constant 0 : index
    %6 = vector.load %arg3[%c0_6, %c0_7] : memref<1x2xf32, #tpu.memory_space<vmem>>, vector<1x2xf32>
    %7 = arith.addf %5, %6 : vector<1x2xf32>
    %cst_8 = arith.constant 0.000000e+00 : f32
    %8 = vector.broadcast %cst_8 : f32 to vector<1x2xf32>
    %9 = arith.maximumf %7, %8 : vector<1x2xf32>
    %c0_9 = arith.constant 0 : index
    %c0_10 = arith.constant 0 : index
    %10 = vector.load %arg4[%c0_9, %c0_10] : memref<2x32xf32, #tpu.memory_space<vmem>>, vector<2x32xf32>
    %cst_11 = arith.constant dense<0.000000e+00> : vector<1x32xf32>
    %11 = tpu.matmul %9, %10, %cst_11 {dimension_numbers = #tpu.dot_dimension_numbers<[1], [0], [0], [1], [0, 0, 1, 1], [], []>} : vector<1x2xf32>, vector<2x32xf32>, vector<1x32xf32> -> vector<1x32xf32>
    %c0_12 = arith.constant 0 : index
    %c0_13 = arith.constant 0 : index
    %12 = vector.load %arg5[%c0_12, %c0_13] : memref<1x32xf32, #tpu.memory_space<vmem>>, vector<1x32xf32>
    %13 = arith.addf %11, %12 : vector<1x32xf32>
    %14 = arith.negf %13 : vector<1x32xf32>
    %15 = math.exp %14 : vector<1x32xf32>
    %cst_14 = arith.constant 1.000000e+00 : f32
    %16 = vector.broadcast %cst_14 : f32 to vector<1x32xf32>
    %17 = arith.addf %16, %15 : vector<1x32xf32>
    %18 = arith.divf %16, %17 : vector<1x32xf32>
    %cst_15 = arith.constant dense<0.000000e+00> : vector<1x256xf32>
    %19 = vector.multi_reduction <add>, %0, %cst_15 [1] : vector<1x32x256xf32> to vector<1x256xf32>
    %cst_16 = arith.constant 3.125000e-02 : f32
    %20 = vector.broadcast %cst_16 : f32 to vector<1x256xf32>
    %21 = arith.mulf %19, %20 : vector<1x256xf32>
    %cst_17 = arith.constant dense<0xFF800000> : vector<1x256xf32>
    %22 = vector.multi_reduction <maximumf>, %0, %cst_17 [1] : vector<1x32x256xf32> to vector<1x256xf32>
    %23 = tpu.concatenate %21, %22 in 1 : vector<1x256xf32>, vector<1x256xf32> -> vector<1x512xf32>
    %c0_18 = arith.constant 0 : index
    %c0_19 = arith.constant 0 : index
    %24 = vector.load %arg6[%c0_18, %c0_19] : memref<512x256xf32, #tpu.memory_space<vmem>>, vector<512x256xf32>
    %cst_20 = arith.constant dense<0.000000e+00> : vector<1x256xf32>
    %25 = tpu.matmul %23, %24, %cst_20 {dimension_numbers = #tpu.dot_dimension_numbers<[1], [0], [0], [1], [0, 0, 1, 1], [], []>} : vector<1x512xf32>, vector<512x256xf32>, vector<1x256xf32> -> vector<1x256xf32>
    %c0_21 = arith.constant 0 : index
    %c0_22 = arith.constant 0 : index
    %26 = memref.load %arg7[%c0_21, %c0_22] : memref<1x1xf32, #tpu.memory_space<smem>>
    %27 = vector.broadcast %26 : f32 to vector<1x256xf32>
    %28 = arith.addf %25, %27 : vector<1x256xf32>
    %29 = arith.negf %28 : vector<1x256xf32>
    %30 = math.exp %29 : vector<1x256xf32>
    %cst_23 = arith.constant 1.000000e+00 : f32
    %31 = vector.broadcast %cst_23 : f32 to vector<1x256xf32>
    %32 = arith.addf %31, %30 : vector<1x256xf32>
    %33 = arith.divf %31, %32 : vector<1x256xf32>
    %34 = vector.shape_cast %18 : vector<1x32xf32> to vector<1x32x1xf32>
    %cst_24 = arith.constant 1.000000e+00 : f32
    %35 = vector.broadcast %cst_24 : f32 to vector<1x32x1xf32>
    %36 = arith.addf %35, %34 : vector<1x32x1xf32>
    %37 = vector.shape_cast %33 : vector<1x256xf32> to vector<1x1x256xf32>
    %38 = vector.broadcast %36 : vector<1x32x1xf32> to vector<1x32x256xf32>
    %39 = vector.broadcast %37 : vector<1x1x256xf32> to vector<1x32x256xf32>
    %40 = arith.addf %38, %39 : vector<1x32x256xf32>
    %41 = arith.mulf %0, %40 : vector<1x32x256xf32>
    %c0_25 = arith.constant 0 : index
    %c0_26 = arith.constant 0 : index
    %c0_27 = arith.constant 0 : index
    %42 = vector.load %arg8[%c0_25, %c0_26, %c0_27] : memref<1x32x256xf32, #tpu.memory_space<vmem>>, vector<1x32x256xf32>
    tpu.vector_store %arg8[%c0_25, %c0_26, %c0_27], %41 {strides = array<i32>} : memref<1x32x256xf32, #tpu.memory_space<vmem>>, vector<1x32x256xf32>,
    return
  }
  func.func @transform_0(%arg0: i32) -> (i32, i32, i32) {
    %c0_i32 = arith.constant 0 : i32
    %c0_i32_0 = arith.constant 0 : i32
    %c0_i32_1 = arith.constant 0 : i32
    return %arg0, %c0_i32, %c0_i32_0 : i32, i32, i32
  }
  func.func @transform_1(%arg0: i32) -> (i32, i32) {
    %c0_i32 = arith.constant 0 : i32
    %c0_i32_0 = arith.constant 0 : i32
    %c0_i32_1 = arith.constant 0 : i32
    return %c0_i32, %c0_i32_0 : i32, i32
  }
  func.func @transform_2(%arg0: i32) -> (i32, i32) {
    %c0_i32 = arith.constant 0 : i32
    %c0_i32_0 = arith.constant 0 : i32
    %c0_i32_1 = arith.constant 0 : i32
    return %c0_i32, %c0_i32_0 : i32, i32
  }
  func.func @transform_3(%arg0: i32) -> (i32, i32) {
    %c0_i32 = arith.constant 0 : i32
    %c0_i32_0 = arith.constant 0 : i32
    %c0_i32_1 = arith.constant 0 : i32
    return %c0_i32, %c0_i32_0 : i32, i32
  }
  func.func @transform_4(%arg0: i32) -> (i32, i32) {
    %c0_i32 = arith.constant 0 : i32
    %c0_i32_0 = arith.constant 0 : i32
    %c0_i32_1 = arith.constant 0 : i32
    return %c0_i32, %c0_i32_0 : i32, i32
  }
  func.func @transform_5(%arg0: i32) -> (i32, i32) {
    %c0_i32 = arith.constant 0 : i32
    %c0_i32_0 = arith.constant 0 : i32
    %c0_i32_1 = arith.constant 0 : i32
    return %c0_i32, %c0_i32_0 : i32, i32
  }
  func.func @transform_6(%arg0: i32) -> (i32, i32) {
    %c0_i32 = arith.constant 0 : i32
    %c0_i32_0 = arith.constant 0 : i32
    %c0_i32_1 = arith.constant 0 : i32
    return %c0_i32, %c0_i32_0 : i32, i32
  }
  func.func @transform_7(%arg0: i32) -> (i32, i32, i32) {
    %c0_i32 = arith.constant 0 : i32
    %c0_i32_0 = arith.constant 0 : i32
    %c0_i32_1 = arith.constant 0 : i32
    return %arg0, %c0_i32, %c0_i32_0 : i32, i32, i32
  }
}

</mosaic_0001>

<llo_original>
// kernel: tpu_custom_call.1
$region0: #{tpu_custom_call.1}
  #allocation0 [shape = 'u32[]', space=smem, size = 0x4, offset = 0x4, fixed_abs, tag = 'smem constant byte address 0x4 - core index']
  #allocation1 [shape = 'u32[144,128]{1,0:T(1,128)}', space=vmem, size = 0x12000, scoped, tag = 'internal scratch']
  #allocation2 [shape = 'f32[1,1]{1,0:T(1,128)S(6)}', space=smem, size = 0x200, scoped, tag = 'scoped memory for tpu_custom_call.1']
  %s0 = inlined_call_operand.hbm [shape: f32[2,32,256], index: 0, kind: input, shape index: {}]
  %s1 = inlined_call_operand.vmem [shape: f32[32,2], index: 1, kind: input, shape index: {}]
  %s2 = inlined_call_operand.vmem [shape: f32[1,2], index: 2, kind: input, shape index: {}]
  %s3 = inlined_call_operand.vmem [shape: f32[2,32], index: 3, kind: input, shape index: {}]
  %s4 = inlined_call_operand.vmem [shape: f32[1,32], index: 4, kind: input, shape index: {}]
  %s5 = inlined_call_operand.hbm [shape: f32[512,256], index: 5, kind: input, shape index: {}]
  %s6 = inlined_call_operand.<no memory space> [shape: f32[1,1], index: 6, kind: input, shape index: {}]
  %s7 = inlined_call_operand.hbm [shape: f32[2,32,256], index: 7, kind: output, shape index: {}]
  %s8 = sld [smem:[#allocation0]]
  $region69: #{tpu_custom_call.1} parent=0
    _
  %s10 = ssub.s32 1, %s8
  %s11 = scalar_select 0, %s10, %s8
  %12 = sst [smem:[#allocation2]] %s6
  $region1: #{tpu_custom_call.1} parent=0
    #allocation3 [shape = 'u8[65536]{0}', space=vmem, size = 0x10000, scoped, tag = 'input window, operand 0']
    #allocation4 [shape = 's32[2]{0}', space=sflag, size = 0x8, scoped, tag = 'scoped memory for tpu_custom_call.1']
    #allocation5 [shape = 's32[2]{0}', space=sflag, size = 0x8, scoped, tag = 'scoped memory for tpu_custom_call.1']
    #allocation6 [shape = 'u8[524288]{0}', space=vmem, size = 0x80000, scoped, tag = 'input window, operand 5, single buffered']
    #allocation7 [shape = 's32[1]{0}', space=sflag, size = 0x4, scoped, tag = 'scoped memory for tpu_custom_call.1']
    #allocation8 [shape = 'u8[65536]{0}', space=vmem, size = 0x10000, scoped, tag = 'output window, operand 0']
    %13 = vsyncpa [#allocation4], 0
    %s14 = scalar_lea.sflag [#allocation4], 1
    %15 = vsyncpa %s14, 0
    %16 = vsyncpa [#allocation7], 0
    %17 = vsyncpa [#allocation5], 0
    %s18 = scalar_lea.sflag [#allocation5], 1
    %19 = vsyncpa %s18, 0
    loop: start=0, step=1, limit=4
    $region2: #{tpu_custom_call.1} parent=1 // loop_pre_header
      _
    $region3: #{tpu_custom_call.1} parent=1 // loop_header
      %s21 = sphi 0, %s25
      %p22 = scmp.ge.s32.totalorder %s21, 4
      %s31 = sphi 0, %s33
      %s34 = sphi 0, %s31
      %s35 = sphi 0, %s34
      %s51 = sphi 0, %s35
      %s55 = sphi 0, %s55
      %s57 = sphi 0, %s55
      %s58 = sphi 0, %s57
      %s72 = sphi 0, %s58
      %s76 = sphi 0, %s76
      %s78 = sphi 0, %s76
      %s79 = sphi 0, %s78
      %s93 = sphi 0, %s79
      %s97 = sphi 0, %s97
      %s99 = sphi 0, %s97
      %s100 = sphi 0, %s99
      %s114 = sphi 0, %s100
      %s118 = sphi 0, %s118
      %s120 = sphi 0, %s118
      %s121 = sphi 0, %s120
      %s135 = sphi 0, %s121
      %s139 = sphi 0, %s139
      %s141 = sphi 0, %s139
      %s142 = sphi 0, %s141
      %s156 = sphi 0, %s142
      %s160 = sphi 0, %s160
      %s162 = sphi 0, %s160
      %s163 = sphi 0, %s162
      %s177 = sphi 0, %s163
      %s183 = sphi 0, %s185
      %s186 = sphi 0, %s183
      %s187 = sphi 0, %s186
      %s203 = sphi 0, %s187
    $region4: #{tpu_custom_call.1} parent=1 // loop_header_branch
      %24 = sbr.rel (%p22) target = $region8
    $region5: #{tpu_custom_call.1} parent=1 // loop_body
      %s26 = ssub.s32 %s21, 1
      %s27 = ssub.s32 %s21, 2
      %s28 = sadd.s32 %s21, 1
      %s29 = ssub.s32 %s21, %s28
      %p30 = scmp.eq.s32.totalorder %s29, 0
      %s32 = sadd.s32 %s31, 1
      %s33 = scalar_select %p30, %s31, %s32
      %p36 = pneg %p30
      %p37 = scmp.eq.s32.totalorder %s21, 1
      %p38 = por %p36, %p37
      %p39 = scmp.ne.s32.totalorder %s31, %s34
      %p40 = scmp.eq.s32.totalorder %s21, 0
      %p41 = por %p39, %p40
      %p42 = scmp.ne.s32.totalorder %s31, %s34
      %p43 = scmp.eq.s32.totalorder %s26, 1
      %p44 = por %p42, %p43
      %p45 = scmp.ne.s32.totalorder %s34, %s35
      %p46 = scmp.eq.s32.totalorder %s26, 0
      %p47 = por %p45, %p46
      %p48 = scmp.ne.s32.totalorder %s34, %s35
      %p49 = scmp.eq.s32.totalorder %s27, 1
      %p50 = por %p48, %p49
      %p52 = scmp.ne.s32.totalorder %s35, %s51
      %p53 = scmp.eq.s32.totalorder %s27, 0
      %p54 = por %p52, %p53
      %s56 = sadd.s32 %s55, 1
      %p59 = scmp.eq.s32.totalorder %s21, 1
      %p60 = scmp.ne.s32.totalorder %s55, %s57
      %p61 = scmp.eq.s32.totalorder %s21, 0
      %p62 = por %p60, %p61
      %p63 = scmp.ne.s32.totalorder %s55, %s57
      %p64 = scmp.eq.s32.totalorder %s26, 1
      %p65 = por %p63, %p64
      %p66 = scmp.ne.s32.totalorder %s57, %s58
      %p67 = scmp.eq.s32.totalorder %s26, 0
      %p68 = por %p66, %p67
      %p69 = scmp.ne.s32.totalorder %s57, %s58
      %p70 = scmp.eq.s32.totalorder %s27, 1
      %p71 = por %p69, %p70
      %p73 = scmp.ne.s32.totalorder %s58, %s72
      %p74 = scmp.eq.s32.totalorder %s27, 0
      %p75 = por %p73, %p74
      %s77 = sadd.s32 %s76, 1
      %p80 = scmp.eq.s32.totalorder %s21, 1
      %p81 = scmp.ne.s32.totalorder %s76, %s78
      %p82 = scmp.eq.s32.totalorder %s21, 0
      %p83 = por %p81, %p82
      %p84 = scmp.ne.s32.totalorder %s76, %s78
      %p85 = scmp.eq.s32.totalorder %s26, 1
      %p86 = por %p84, %p85
      %p87 = scmp.ne.s32.totalorder %s78, %s79
      %p88 = scmp.eq.s32.totalorder %s26, 0
      %p89 = por %p87, %p88
      %p90 = scmp.ne.s32.totalorder %s78, %s79
      %p91 = scmp.eq.s32.totalorder %s27, 1
      %p92 = por %p90, %p91
      %p94 = scmp.ne.s32.totalorder %s79, %s93
      %p95 = scmp.eq.s32.totalorder %s27, 0
      %p96 = por %p94, %p95
      %s98 = sadd.s32 %s97, 1
      %p101 = scmp.eq.s32.totalorder %s21, 1
      %p102 = scmp.ne.s32.totalorder %s97, %s99
      %p103 = scmp.eq.s32.totalorder %s21, 0
      %p104 = por %p102, %p103
      %p105 = scmp.ne.s32.totalorder %s97, %s99
      %p106 = scmp.eq.s32.totalorder %s26, 1
      %p107 = por %p105, %p106
      %p108 = scmp.ne.s32.totalorder %s99, %s100
      %p109 = scmp.eq.s32.totalorder %s26, 0
      %p110 = por %p108, %p109
      %p111 = scmp.ne.s32.totalorder %s99, %s100
      %p112 = scmp.eq.s32.totalorder %s27, 1
      %p113 = por %p111, %p112
      %p115 = scmp.ne.s32.totalorder %s100, %s114
      %p116 = scmp.eq.s32.totalorder %s27, 0
      %p117 = por %p115, %p116
      %s119 = sadd.s32 %s118, 1
      %p122 = scmp.eq.s32.totalorder %s21, 1
      %p123 = scmp.ne.s32.totalorder %s118, %s120
      %p124 = scmp.eq.s32.totalorder %s21, 0
      %p125 = por %p123, %p124
      %p126 = scmp.ne.s32.totalorder %s118, %s120
      %p127 = scmp.eq.s32.totalorder %s26, 1
      %p128 = por %p126, %p127
      %p129 = scmp.ne.s32.totalorder %s120, %s121
      %p130 = scmp.eq.s32.totalorder %s26, 0
      %p131 = por %p129, %p130
      %p132 = scmp.ne.s32.totalorder %s120, %s121
      %p133 = scmp.eq.s32.totalorder %s27, 1
      %p134 = por %p132, %p133
      %p136 = scmp.ne.s32.totalorder %s121, %s135
      %p137 = scmp.eq.s32.totalorder %s27, 0
      %p138 = por %p136, %p137
      %s140 = sadd.s32 %s139, 1
      %p143 = scmp.eq.s32.totalorder %s21, 1
      %p144 = scmp.ne.s32.totalorder %s139, %s141
      %p145 = scmp.eq.s32.totalorder %s21, 0
      %p146 = por %p144, %p145
      %p147 = scmp.ne.s32.totalorder %s139, %s141
      %p148 = scmp.eq.s32.totalorder %s26, 1
      %p149 = por %p147, %p148
      %p150 = scmp.ne.s32.totalorder %s141, %s142
      %p151 = scmp.eq.s32.totalorder %s26, 0
      %p152 = por %p150, %p151
      %p153 = scmp.ne.s32.totalorder %s141, %s142
      %p154 = scmp.eq.s32.totalorder %s27, 1
      %p155 = por %p153, %p154
      %p157 = scmp.ne.s32.totalorder %s142, %s156
      %p158 = scmp.eq.s32.totalorder %s27, 0
      %p159 = por %p157, %p158
      %s161 = sadd.s32 %s160, 1
      %p164 = scmp.eq.s32.totalorder %s21, 1
      %p165 = scmp.ne.s32.totalorder %s160, %s162
      %p166 = scmp.eq.s32.totalorder %s21, 0
      %p167 = por %p165, %p166
      %p168 = scmp.ne.s32.totalorder %s160, %s162
      %p169 = scmp.eq.s32.totalorder %s26, 1
      %p170 = por %p168, %p169
      %p171 = scmp.ne.s32.totalorder %s162, %s163
      %p172 = scmp.eq.s32.totalorder %s26, 0
      %p173 = por %p171, %p172
      %p174 = scmp.ne.s32.totalorder %s162, %s163
      %p175 = scmp.eq.s32.totalorder %s27, 1
      %p176 = por %p174, %p175
      %p178 = scmp.ne.s32.totalorder %s163, %s177
      %p179 = scmp.eq.s32.totalorder %s27, 0
      %p180 = por %p178, %p179
      %s181 = ssub.s32 %s21, %s28
      %p182 = scmp.eq.s32.totalorder %s181, 0
      %s184 = sadd.s32 %s183, 1
      %s185 = scalar_select %p182, %s183, %s184
      %p188 = pneg %p182
      %p189 = scmp.eq.s32.totalorder %s21, 1
      %p190 = por %p188, %p189
      %p191 = scmp.ne.s32.totalorder %s183, %s186
      %p192 = scmp.eq.s32.totalorder %s21, 0
      %p193 = por %p191, %p192
      %p194 = scmp.ne.s32.totalorder %s183, %s186
      %p195 = scmp.eq.s32.totalorder %s26, 1
      %p196 = por %p194, %p195
      %p197 = scmp.ne.s32.totalorder %s186, %s187
      %p198 = scmp.eq.s32.totalorder %s26, 0
      %p199 = por %p197, %p198
      %p200 = scmp.ne.s32.totalorder %s186, %s187
      %p201 = scmp.eq.s32.totalorder %s27, 1
      %p202 = por %p200, %p201
      %p204 = scmp.ne.s32.totalorder %s187, %s203
      %p205 = scmp.eq.s32.totalorder %s27, 0
      %p206 = por %p204, %p205
      %p207 = scmp.le.s32.totalorder 1, %s21
      %p208 = scmp.lt.s32.totalorder %s21, 3
      %p209 = pnand %p207, %p208
      %p210 = pneg %p209
      // Predicated region
      $region9: #{tpu_custom_call.1} parent=5 // pred_check
        _
      $region10: #{tpu_custom_call.1} parent=5 // pred_check_branch
        %212 = sbr.rel (%p209) target = $region12
      $region11: #{tpu_custom_call.1} parent=5 // pred_region
        %s213 = ssub.s32 %s21, 1
        // Predicated region
        $region13: #{tpu_custom_call.1} parent=11 // pred_check
          %p214 = pneg %p68
        $region14: #{tpu_custom_call.1} parent=11 // pred_check_branch
          %216 = sbr.rel (%p214) target = $region16
        $region15: #{tpu_custom_call.1} parent=11 // pred_region
          _
        $region16: #{tpu_custom_call.1} parent=11 // pred_fallthru
          _
        // Predicated region
        $region17: #{tpu_custom_call.1} parent=11 // pred_check
          %p217 = pneg %p89
        $region18: #{tpu_custom_call.1} parent=11 // pred_check_branch
          %219 = sbr.rel (%p217) target = $region20
        $region19: #{tpu_custom_call.1} parent=11 // pred_region
          _
        $region20: #{tpu_custom_call.1} parent=11 // pred_fallthru
          _
        // Predicated region
        $region21: #{tpu_custom_call.1} parent=11 // pred_check
          %p220 = pneg %p110
        $region22: #{tpu_custom_call.1} parent=11 // pred_check_branch
          %222 = sbr.rel (%p220) target = $region24
        $region23: #{tpu_custom_call.1} parent=11 // pred_region
          _
        $region24: #{tpu_custom_call.1} parent=11 // pred_fallthru
          _
        // Predicated region
        $region25: #{tpu_custom_call.1} parent=11 // pred_check
          %p223 = pneg %p131
        $region26: #{tpu_custom_call.1} parent=11 // pred_check_branch
          %225 = sbr.rel (%p223) target = $region28
        $region27: #{tpu_custom_call.1} parent=11 // pred_region
          _
        $region28: #{tpu_custom_call.1} parent=11 // pred_fallthru
          _
        // Predicated region
        $region29: #{tpu_custom_call.1} parent=11 // pred_check
          %p226 = pneg %p152
        $region30: #{tpu_custom_call.1} parent=11 // pred_check_branch
          %228 = sbr.rel (%p226) target = $region32
        $region31: #{tpu_custom_call.1} parent=11 // pred_region
          %s230 = ssub.s32 16384, 16384
          %231 = vsyncadd [#allocation7], %s230
          %s232 = sshll.u32 [#allocation6], 4
          %s233 = int_to_ptr.vmem [resolvable:$true] %s232
          %238 = dma.hbm_to_vmem [thread:$0]  %s5, 16384, %s233, [#allocation7], 256, 256, 16
        $region32: #{tpu_custom_call.1} parent=11 // pred_fallthru
          _
        // Predicated region
        $region33: #{tpu_custom_call.1} parent=11 // pred_check
          %p239 = pneg %p173
        $region34: #{tpu_custom_call.1} parent=11 // pred_check_branch
          %241 = sbr.rel (%p239) target = $region36
        $region35: #{tpu_custom_call.1} parent=11 // pred_region
          _
        $region36: #{tpu_custom_call.1} parent=11 // pred_fallthru
          _
      $region12: #{tpu_custom_call.1} parent=5 // pred_fallthru
        _
      %p242 = scmp.lt.s32.totalorder %s21, 2
      // Predicated region
      $region37: #{tpu_custom_call.1} parent=5 // pred_check
        %p243 = pneg %p242
      $region38: #{tpu_custom_call.1} parent=5 // pred_check_branch
        %245 = sbr.rel (%p243) target = $region40
      $region39: #{tpu_custom_call.1} parent=5 // pred_region
        // Predicated region
        $region41: #{tpu_custom_call.1} parent=39 // pred_check
          %p246 = pneg %p41
        $region42: #{tpu_custom_call.1} parent=39 // pred_check_branch
          %248 = sbr.rel (%p246) target = $region44
        $region43: #{tpu_custom_call.1} parent=39 // pred_region
          %s249 = sand.u32 %s31, 1
          %s250 = scalar_lea.sflag [#allocation4], %s249
          %s251 = sand.u32 %s31, 1
          %s252 = smul.addr %s251, 64
          %s253 = scalar_lea.vmem [#allocation3], %s252
          %s255 = ssub.s32 1024, 1024
          %256 = vsyncadd %s250, %s255
          %s257 = smul.addr %s21, 8
          %s258 = smul.addr %s257, 128
          %s259 = scalar_lea.hbm %s0, %s258
          %s260 = sshll.u32 %s253, 4
          %s261 = int_to_ptr.vmem [resolvable:$true] %s260
          %266 = dma.hbm_to_vmem [thread:$0]  %s259, 1024, %s261, %s250, 256, 256, 16
        $region44: #{tpu_custom_call.1} parent=39 // pred_fallthru
          _
      $region40: #{tpu_custom_call.1} parent=5 // pred_fallthru
        _
      %p267 = scmp.le.s32.totalorder 1, %s21
      %p268 = scmp.lt.s32.totalorder %s21, 3
      %p269 = pnand %p267, %p268
      %p270 = pneg %p269
      // Predicated region
      $region45: #{tpu_custom_call.1} parent=5 // pred_check
        _
      $region46: #{tpu_custom_call.1} parent=5 // pred_check_branch
        %272 = sbr.rel (%p269) target = $region48
      $region47: #{tpu_custom_call.1} parent=5 // pred_region
        %s273 = ssub.s32 %s21, 1
        %s274 = sand.u32 %s34, 1
        %s275 = scalar_lea.sflag [#allocation4], %s274
        %s276 = sand.u32 %s34, 1
        %s277 = smul.addr %s276, 64
        %s278 = scalar_lea.vmem [#allocation3], %s277
        // Predicated region
        $region49: #{tpu_custom_call.1} parent=47 // pred_check
          %p279 = pneg %p47
        $region50: #{tpu_custom_call.1} parent=47 // pred_check_branch
          %281 = sbr.rel (%p279) target = $region52
        $region51: #{tpu_custom_call.1} parent=47 // pred_region
          %282 = dma.done %s275, 1024
        $region52: #{tpu_custom_call.1} parent=47 // pred_fallthru
          _
        // Predicated region
        $region53: #{tpu_custom_call.1} parent=47 // pred_check
          %p283 = pneg %p152
        $region54: #{tpu_custom_call.1} parent=47 // pred_check_branch
          %285 = sbr.rel (%p283) target = $region56
        $region55: #{tpu_custom_call.1} parent=47 // pred_region
          %286 = dma.done [#allocation7], 16384
        $region56: #{tpu_custom_call.1} parent=47 // pred_fallthru
          _
        %s287 = sand.u32 %s34, 1
        %s288 = scalar_lea.sflag [#allocation4], %s287
        %s289 = sand.u32 %s34, 1
        %s290 = smul.addr %s289, 64
        %s291 = scalar_lea.vmem [#allocation3], %s290
        %p292 = pneg %p47
        %p293 = pneg %p44
        %p294 = pneg %p68
        %p295 = pneg %p65
        %p296 = pneg %p89
        %p297 = pneg %p86
        %p298 = pneg %p110
        %p299 = pneg %p107
        %p300 = pneg %p131
        %p301 = pneg %p128
        %p302 = pneg %p152
        %p303 = pneg %p149
        %p304 = pneg %p173
        %p305 = pneg %p170
        %p306 = pneg %p199
        %p307 = pneg %p196
        %s308 = sand.u32 %s186, 1
        %s309 = scalar_lea.sflag [#allocation5], %s308
        %s310 = sand.u32 %s186, 1
        %s311 = smul.addr %s310, 64
        %s312 = scalar_lea.vmem [#allocation8], %s311
        %v313 = vld [vmem:[%s278] sm:$0xff]
        %v314 = vld [vmem:[%s278 + $0x8] sm:$0xff]
        %v315 = vld [vmem:[%s278 + $0x10] sm:$0xff]
        %v316 = vld [vmem:[%s278 + $0x18] sm:$0xff]
        %v317 = vld [vmem:[%s278 + $0x20] sm:$0xff]
        %v318 = vld [vmem:[%s278 + $0x28] sm:$0xff]
        %v319 = vld [vmem:[%s278 + $0x30] sm:$0xff]
        %v320 = vld [vmem:[%s278 + $0x38] sm:$0xff]
        %v321 = vadd.f32 %v313, %v314
        %322 = vadd.xlane.f32.xlu0 %v321
        %v323 = vpop.xlane.xlu0 %322
        %v324 = vadd.f32 %v315, %v316
        %325 = vadd.xlane.f32.xlu0 %v324
        %v326 = vpop.xlane.xlu0 %325
        %v327 = vadd.f32 %v317, %v318
        %328 = vadd.xlane.f32.xlu0 %v327
        %v329 = vpop.xlane.xlu0 %328
        %v330 = vadd.f32 %v319, %v320
        %331 = vadd.xlane.f32.xlu0 %v330
        %v332 = vpop.xlane.xlu0 %331
        %v333 = vmul.f32 %v323, 0.00390625
        %v334 = vmul.f32 %v326, 0.00390625
        %v335 = vmul.f32 %v329, 0.00390625
        %v336 = vmul.f32 %v332, 0.00390625
        %v337 = vld [vmem:[%s1] sm:$0xff]
        %v338 = vld [vmem:[%s1 + $0x8] sm:$0xff]
        %v339 = vld [vmem:[%s1 + $0x10] sm:$0xff]
        %v340 = vld [vmem:[%s1 + $0x18] sm:$0xff]
        %v341 = vld [vmem:[%s2] sm:$0x1]
        %v346 = vlaneseq
        %v347 = vand.u32 %v346, 127
        %v348 = vlaneseq
        %v349 = vshrl.u32 %v348, 7
        %v350 = vsub.s32 %v347, %v349
        %v351 = vrot.slane %v333, %v350
        %v352 = vadd.s32 %v347, 4294967288
        %v353 = vlaneseq
        %v354 = vshrl.u32 %v353, 7
        %v355 = vsub.s32 %v352, %v354
        %v356 = vrot.slane %v334, %v355
        %vm357 = vcmask 130112
        %v358 = vsel %vm357, %v356, %v351
        %v359 = vadd.s32 %v347, 4294967280
        %v360 = vlaneseq
        %v361 = vshrl.u32 %v360, 7
        %v362 = vsub.s32 %v359, %v361
        %v363 = vrot.slane %v335, %v362
        %vm364 = vcmask 195712
        %v365 = vsel %vm364, %v363, %v358
        %v366 = vadd.s32 %v347, 4294967272
        %v367 = vlaneseq
        %v368 = vshrl.u32 %v367, 7
        %v369 = vsub.s32 %v366, %v368
        %v370 = vrot.slane %v336, %v369
        %vm371 = vcmask 261312
        %v372 = vsel %vm371, %v370, %v365
        %vm373 = vcmask 261120
        %v374 = vsel %vm373, %v372, 0
        %376 = vmatprep.subr.mxu0 0.0
        %377 = vmatpush1.msra.mxu0 %v337
        %378 = vmatprep.subr.mxu0 0.0
        %379 = vmatpush1.msra.mxu0 %v338
        %380 = vmatprep.subr.mxu0 0.0
        %381 = vmatpush1.msra.mxu0 %v339
        %382 = vmatprep.subr.mxu0 0.0
        %383 = vmatpush1.msra.mxu0 %v340
        %384 = vmatprep.subr.mxu0 0.0
        %385 = vmatpush1.msra.mxu0 0.0
        %386 = vmatprep.subr.mxu0 0.0
        %387 = vmatpush1.msra.mxu0 0.0
        %388 = vmatprep.subr.mxu0 0.0
        %389 = vmatpush1.msra.mxu0 0.0
        %390 = vmatprep.subr.mxu0 0.0
        %391 = vmatpush1.msra.mxu0 0.0
        %392 = vmatprep.subr.mxu0 0.0
        %393 = vmatpush1.msra.mxu0 0.0
        %394 = vmatprep.subr.mxu0 0.0
        %395 = vmatpush1.msra.mxu0 0.0
        %396 = vmatprep.subr.mxu0 0.0
        %397 = vmatpush1.msra.mxu0 0.0
        %398 = vmatprep.subr.mxu0 0.0
        %399 = vmatpush1.msra.mxu0 0.0
        %400 = vmatprep.subr.mxu0 0.0
        %401 = vmatpush1.msra.mxu0 0.0
        %402 = vmatprep.subr.mxu0 0.0
        %403 = vmatpush1.msra.mxu0 0.0
        %404 = vmatprep.subr.mxu0 0.0
        %405 = vmatpush1.msra.mxu0 0.0
        %406 = vmatprep.subr.mxu0 0.0
        %407 = vmatpush1.msra.mxu0 0.0
        %408 = vmatprep.subr.mxu0 0.0
        %409 = vmatpush1.msra.mxu0 0.0
        %410 = vmatprep.subr.mxu0 0.0
        %411 = vmatpush1.msra.mxu0 0.0
        %412 = vmatprep.subr.mxu0 0.0
        %413 = vmatpush1.msra.mxu0 0.0
        %414 = vmatprep.subr.mxu0 0.0
        %415 = vmatpush1.msra.mxu0 0.0
        %416 = vmatprep.subr.mxu0 0.0
        %417 = vmatpush1.msra.mxu0 0.0
        %418 = vmatprep.subr.mxu0 0.0
        %419 = vmatpush1.msra.mxu0 0.0
        %420 = vmatprep.subr.mxu0 0.0
        %421 = vmatpush1.msra.mxu0 0.0
        %422 = vmatprep.subr.mxu0 0.0
        %423 = vmatpush1.msra.mxu0 0.0
        %424 = vmatprep.subr.mxu0 0.0
        %425 = vmatpush1.msra.mxu0 0.0
        %426 = vmatprep.subr.mxu0 0.0
        %427 = vmatpush1.msra.mxu0 0.0
        %428 = vmatprep.subr.mxu0 0.0
        %429 = vmatpush1.msra.mxu0 0.0
        %430 = vmatprep.subr.mxu0 0.0
        %431 = vmatpush1.msra.mxu0 0.0
        %432 = vmatprep.subr.mxu0 0.0
        %433 = vmatpush1.msra.mxu0 0.0
        %434 = vmatprep.subr.mxu0 0.0
        %435 = vmatpush1.msra.mxu0 0.0
        %436 = vmatprep.subr.mxu0 0.0
        %437 = vmatpush1.msra.mxu0 0.0
        %438 = vmatprep.subr.mxu0 0.0
        %439 = vmatpush1.msra.mxu0 0.0
        %440 = vmatprep.mubr.f32.mxu0 0.0
        %441 = vmatmul.mubr.f32.gmra.mrb[0].mxu0 %v374
        %v442 = vpop.f32.mrb[0].mxu0
        %v443 = vadd.f32 %v341, %v442
        %v444 = vpop.f32.mrb[0].mxu0
        %445 = vdwg.mxu0
        %v446 = vmax.f32 %v443, 0.0
        %v447 = vld [vmem:[%s3] sm:$0x3]
        %v448 = vld [vmem:[%s4] sm:$0x1]
        %vm449 = vcmask 15360
        %v451 = vsel %vm449, %v446, 0
        %vm453 = vcmask 1041408
        %v455 = vsel %vm453, %v447, 0
        %457 = vmatprep.subr.mxu0 0.0
        %458 = vmatpush1.msra.mxu0 %v455
        %459 = vmatprep.subr.mxu0 0.0
        %460 = vmatpush1.msra.mxu0 0.0
        %461 = vmatprep.subr.mxu0 0.0
        %462 = vmatpush1.msra.mxu0 0.0
        %463 = vmatprep.subr.mxu0 0.0
        %464 = vmatpush1.msra.mxu0 0.0
        %465 = vmatprep.subr.mxu0 0.0
        %466 = vmatpush1.msra.mxu0 0.0
        %467 = vmatprep.subr.mxu0 0.0
        %468 = vmatpush1.msra.mxu0 0.0
        %469 = vmatprep.subr.mxu0 0.0
        %470 = vmatpush1.msra.mxu0 0.0
        %471 = vmatprep.subr.mxu0 0.0
        %472 = vmatpush1.msra.mxu0 0.0
        %473 = vmatprep.subr.mxu0 0.0
        %474 = vmatpush1.msra.mxu0 0.0
        %475 = vmatprep.subr.mxu0 0.0
        %476 = vmatpush1.msra.mxu0 0.0
        %477 = vmatprep.subr.mxu0 0.0
        %478 = vmatpush1.msra.mxu0 0.0
        %479 = vmatprep.subr.mxu0 0.0
        %480 = vmatpush1.msra.mxu0 0.0
        %481 = vmatprep.subr.mxu0 0.0
        %482 = vmatpush1.msra.mxu0 0.0
        %483 = vmatprep.subr.mxu0 0.0
        %484 = vmatpush1.msra.mxu0 0.0
        %485 = vmatprep.subr.mxu0 0.0
        %486 = vmatpush1.msra.mxu0 0.0
        %487 = vmatprep.subr.mxu0 0.0
        %488 = vmatpush1.msra.mxu0 0.0
        %489 = vmatprep.subr.mxu0 0.0
        %490 = vmatpush1.msra.mxu0 0.0
        %491 = vmatprep.subr.mxu0 0.0
        %492 = vmatpush1.msra.mxu0 0.0
        %493 = vmatprep.subr.mxu0 0.0
        %494 = vmatpush1.msra.mxu0 0.0
        %495 = vmatprep.subr.mxu0 0.0
        %496 = vmatpush1.msra.mxu0 0.0
        %497 = vmatprep.subr.mxu0 0.0
        %498 = vmatpush1.msra.mxu0 0.0
        %499 = vmatprep.subr.mxu0 0.0
        %500 = vmatpush1.msra.mxu0 0.0
        %501 = vmatprep.subr.mxu0 0.0
        %502 = vmatpush1.msra.mxu0 0.0
        %503 = vmatprep.subr.mxu0 0.0
        %504 = vmatpush1.msra.mxu0 0.0
        %505 = vmatprep.subr.mxu0 0.0
        %506 = vmatpush1.msra.mxu0 0.0
        %507 = vmatprep.subr.mxu0 0.0
        %508 = vmatpush1.msra.mxu0 0.0
        %509 = vmatprep.subr.mxu0 0.0
        %510 = vmatpush1.msra.mxu0 0.0
        %511 = vmatprep.subr.mxu0 0.0
        %512 = vmatpush1.msra.mxu0 0.0
        %513 = vmatprep.subr.mxu0 0.0
        %514 = vmatpush1.msra.mxu0 0.0
        %515 = vmatprep.subr.mxu0 0.0
        %516 = vmatpush1.msra.mxu0 0.0
        %517 = vmatprep.subr.mxu0 0.0
        %518 = vmatpush1.msra.mxu0 0.0
        %519 = vmatprep.subr.mxu0 0.0
        %520 = vmatpush1.msra.mxu0 0.0
        %521 = vmatprep.mubr.f32.mxu0 0.0
        %522 = vmatmul.mubr.f32.gmra.mrb[0].mxu0 %v451
        %v523 = vpop.f32.mrb[0].mxu0
        %v524 = vadd.f32 %v448, %v523
        %v525 = vpop.f32.mrb[0].mxu0
        %526 = vdwg.mxu0
        %v527 = vxor.u32 %v524, 2147483648
        %v528 = vmul.f32 %v527, 1.442695
        %v529 = vpow.pop %v528
        %v530 = vadd.f32 %v529, 1.0
        %v531 = vrcp.pop %v530
        %v532 = vmul.f32 1.0, %v531
        %v533 = vadd.f32 %v313, %v315
        %v534 = vadd.f32 %v533, %v317
        %v535 = vadd.f32 %v534, %v319
        %v536 = vrot.slane %v535, 4
        %v537 = vadd.f32 %v535, %v536
        %v538 = vrot.slane %v537, 2
        %v539 = vadd.f32 %v537, %v538
        %v540 = vrot.slane %v539, 1
        %v541 = vadd.f32 %v539, %v540
        %v542 = vadd.f32 %v314, %v316
        %v543 = vadd.f32 %v542, %v318
        %v544 = vadd.f32 %v543, %v320
        %v545 = vrot.slane %v544, 4
        %v546 = vadd.f32 %v544, %v545
        %v547 = vrot.slane %v546, 2
        %v548 = vadd.f32 %v546, %v547
        %v549 = vrot.slane %v548, 1
        %v550 = vadd.f32 %v548, %v549
        %v551 = vmul.f32 %v541, 0.03125
        %v552 = vmul.f32 %v550, 0.03125
        %v553 = vmax.f32 %v313, %v317
        %v554 = vmax.f32 %v315, %v319
        %v555 = vmax.f32 %v553, %v554
        %v556 = vrot.slane %v555, 4
        %v557 = vmax.f32 %v555, %v556
        %v558 = vrot.slane %v557, 2
        %v559 = vmax.f32 %v557, %v558
        %v560 = vrot.slane %v559, 1
        %v561 = vmax.f32 %v559, %v560
        %v562 = vmax.f32 %v314, %v318
        %v563 = vmax.f32 %v316, %v320
        %v564 = vmax.f32 %v562, %v563
        %v565 = vrot.slane %v564, 4
        %v566 = vmax.f32 %v564, %v565
        %v567 = vrot.slane %v566, 2
        %v568 = vmax.f32 %v566, %v567
        %v569 = vrot.slane %v568, 1
        %v570 = vmax.f32 %v568, %v569
        %v571 = vld [vmem:[#allocation6] sm:$0xff]
        %v572 = vld [vmem:[#allocation6 + $0x8] sm:$0xff]
        %v573 = vld [vmem:[#allocation6 + $0x10] sm:$0xff]
        %v574 = vld [vmem:[#allocation6 + $0x18] sm:$0xff]
        %v575 = vld [vmem:[#allocation6 + $0x20] sm:$0xff]
        %v576 = vld [vmem:[#allocation6 + $0x28] sm:$0xff]
        %v577 = vld [vmem:[#allocation6 + $0x30] sm:$0xff]
        %v578 = vld [vmem:[#allocation6 + $0x38] sm:$0xff]
        %v579 = vld [vmem:[#allocation6 + $0x40] sm:$0xff]
        %v580 = vld [vmem:[#allocation6 + $0x48] sm:$0xff]
        %v581 = vld [vmem:[#allocation6 + $0x50] sm:$0xff]
        %v582 = vld [vmem:[#allocation6 + $0x58] sm:$0xff]
        %v583 = vld [vmem:[#allocation6 + $0x60] sm:$0xff]
        %v584 = vld [vmem:[#allocation6 + $0x68] sm:$0xff]
        %v585 = vld [vmem:[#allocation6 + $0x70] sm:$0xff]
        %v586 = vld [vmem:[#allocation6 + $0x78] sm:$0xff]
        %v587 = vld [vmem:[#allocation6 + $0x80] sm:$0xff]
        %v588 = vld [vmem:[#allocation6 + $0x88] sm:$0xff]
        %v589 = vld [vmem:[#allocation6 + $0x90] sm:$0xff]
        %v590 = vld [vmem:[#allocation6 + $0x98] sm:$0xff]
        %v591 = vld [vmem:[#allocation6 + $0xa0] sm:$0xff]
        %v592 = vld [vmem:[#allocation6 + $0xa8] sm:$0xff]
        %v593 = vld [vmem:[#allocation6 + $0xb0] sm:$0xff]
        %v594 = vld [vmem:[#allocation6 + $0xb8] sm:$0xff]
        %v595 = vld [vmem:[#allocation6 + $0xc0] sm:$0xff]
        %v596 = vld [vmem:[#allocation6 + $0xc8] sm:$0xff]
        %v597 = vld [vmem:[#allocation6 + $0xd0] sm:$0xff]
        %v598 = vld [vmem:[#allocation6 + $0xd8] sm:$0xff]
        %v599 = vld [vmem:[#allocation6 + $0xe0] sm:$0xff]
        %v600 = vld [vmem:[#allocation6 + $0xe8] sm:$0xff]
        %v601 = vld [vmem:[#allocation6 + $0xf0] sm:$0xff]
        %v602 = vld [vmem:[#allocation6 + $0xf8] sm:$0xff]
        %v603 = vld [vmem:[#allocation6 + $0x100] sm:$0xff]
        %v604 = vld [vmem:[#allocation6 + $0x108] sm:$0xff]
        %v605 = vld [vmem:[#allocation6 + $0x110] sm:$0xff]
        %v606 = vld [vmem:[#allocation6 + $0x118] sm:$0xff]
        %v607 = vld [vmem:[#allocation6 + $0x120] sm:$0xff]
        %v608 = vld [vmem:[#allocation6 + $0x128] sm:$0xff]
        %v609 = vld [vmem:[#allocation6 + $0x130] sm:$0xff]
        %v610 = vld [vmem:[#allocation6 + $0x138] sm:$0xff]
        %v611 = vld [vmem:[#allocation6 + $0x140] sm:$0xff]
        %v612 = vld [vmem:[#allocation6 + $0x148] sm:$0xff]
        %v613 = vld [vmem:[#allocation6 + $0x150] sm:$0xff]
        %v614 = vld [vmem:[#allocation6 + $0x158] sm:$0xff]
        %v615 = vld [vmem:[#allocation6 + $0x160] sm:$0xff]
        %v616 = vld [vmem:[#allocation6 + $0x168] sm:$0xff]
        %v617 = vld [vmem:[#allocation6 + $0x170] sm:$0xff]
        %v618 = vld [vmem:[#allocation6 + $0x178] sm:$0xff]
        %v619 = vld [vmem:[#allocation6 + $0x180] sm:$0xff]
        %v620 = vld [vmem:[#allocation6 + $0x188] sm:$0xff]
        %v621 = vld [vmem:[#allocation6 + $0x190] sm:$0xff]
        %v622 = vld [vmem:[#allocation6 + $0x198] sm:$0xff]
        %v623 = vld [vmem:[#allocation6 + $0x1a0] sm:$0xff]
        %v624 = vld [vmem:[#allocation6 + $0x1a8] sm:$0xff]
        %v625 = vld [vmem:[#allocation6 + $0x1b0] sm:$0xff]
        %v626 = vld [vmem:[#allocation6 + $0x1b8] sm:$0xff]
        %v627 = vld [vmem:[#allocation6 + $0x1c0] sm:$0xff]
        %v628 = vld [vmem:[#allocation6 + $0x1c8] sm:$0xff]
        %v629 = vld [vmem:[#allocation6 + $0x1d0] sm:$0xff]
        %v630 = vld [vmem:[#allocation6 + $0x1d8] sm:$0xff]
        %v631 = vld [vmem:[#allocation6 + $0x1e0] sm:$0xff]
        %v632 = vld [vmem:[#allocation6 + $0x1e8] sm:$0xff]
        %v633 = vld [vmem:[#allocation6 + $0x1f0] sm:$0xff]
        %v634 = vld [vmem:[#allocation6 + $0x1f8] sm:$0xff]
        %v635 = vld [vmem:[#allocation6 + $0x200] sm:$0xff]
        %v636 = vld [vmem:[#allocation6 + $0x208] sm:$0xff]
        %v637 = vld [vmem:[#allocation6 + $0x210] sm:$0xff]
        %v638 = vld [vmem:[#allocation6 + $0x218] sm:$0xff]
        %v639 = vld [vmem:[#allocation6 + $0x220] sm:$0xff]
        %v640 = vld [vmem:[#allocation6 + $0x228] sm:$0xff]
        %v641 = vld [vmem:[#allocation6 + $0x230] sm:$0xff]
        %v642 = vld [vmem:[#allocation6 + $0x238] sm:$0xff]
        %v643 = vld [vmem:[#allocation6 + $0x240] sm:$0xff]
        %v644 = vld [vmem:[#allocation6 + $0x248] sm:$0xff]
        %v645 = vld [vmem:[#allocation6 + $0x250] sm:$0xff]
        %v646 = vld [vmem:[#allocation6 + $0x258] sm:$0xff]
        %v647 = vld [vmem:[#allocation6 + $0x260] sm:$0xff]
        %v648 = vld [vmem:[#allocation6 + $0x268] sm:$0xff]
        %v649 = vld [vmem:[#allocation6 + $0x270] sm:$0xff]
        %v650 = vld [vmem:[#allocation6 + $0x278] sm:$0xff]
        %v651 = vld [vmem:[#allocation6 + $0x280] sm:$0xff]
        %v652 = vld [vmem:[#allocation6 + $0x288] sm:$0xff]
        %v653 = vld [vmem:[#allocation6 + $0x290] sm:$0xff]
        %v654 = vld [vmem:[#allocation6 + $0x298] sm:$0xff]
        %v655 = vld [vmem:[#allocation6 + $0x2a0] sm:$0xff]
        %v656 = vld [vmem:[#allocation6 + $0x2a8] sm:$0xff]
        %v657 = vld [vmem:[#allocation6 + $0x2b0] sm:$0xff]
        %v658 = vld [vmem:[#allocation6 + $0x2b8] sm:$0xff]
        %v659 = vld [vmem:[#allocation6 + $0x2c0] sm:$0xff]
        %v660 = vld [vmem:[#allocation6 + $0x2c8] sm:$0xff]
        %v661 = vld [vmem:[#allocation6 + $0x2d0] sm:$0xff]
        %v662 = vld [vmem:[#allocation6 + $0x2d8] sm:$0xff]
        %v663 = vld [vmem:[#allocation6 + $0x2e0] sm:$0xff]
        %v664 = vld [vmem:[#allocation6 + $0x2e8] sm:$0xff]
        %v665 = vld [vmem:[#allocation6 + $0x2f0] sm:$0xff]
        %v666 = vld [vmem:[#allocation6 + $0x2f8] sm:$0xff]
        %v667 = vld [vmem:[#allocation6 + $0x300] sm:$0xff]
        %v668 = vld [vmem:[#allocation6 + $0x308] sm:$0xff]
        %v669 = vld [vmem:[#allocation6 + $0x310] sm:$0xff]
        %v670 = vld [vmem:[#allocation6 + $0x318] sm:$0xff]
        %v671 = vld [vmem:[#allocation6 + $0x320] sm:$0xff]
        %v672 = vld [vmem:[#allocation6 + $0x328] sm:$0xff]
        %v673 = vld [vmem:[#allocation6 + $0x330] sm:$0xff]
        %v674 = vld [vmem:[#allocation6 + $0x338] sm:$0xff]
        %v675 = vld [vmem:[#allocation6 + $0x340] sm:$0xff]
        %v676 = vld [vmem:[#allocation6 + $0x348] sm:$0xff]
        %v677 = vld [vmem:[#allocation6 + $0x350] sm:$0xff]
        %v678 = vld [vmem:[#allocation6 + $0x358] sm:$0xff]
        %v679 = vld [vmem:[#allocation6 + $0x360] sm:$0xff]
        %v680 = vld [vmem:[#allocation6 + $0x368] sm:$0xff]
        %v681 = vld [vmem:[#allocation6 + $0x370] sm:$0xff]
        %v682 = vld [vmem:[#allocation6 + $0x378] sm:$0xff]
        %v683 = vld [vmem:[#allocation6 + $0x380] sm:$0xff]
        %v684 = vld [vmem:[#allocation6 + $0x388] sm:$0xff]
        %v685 = vld [vmem:[#allocation6 + $0x390] sm:$0xff]
        %v686 = vld [vmem:[#allocation6 + $0x398] sm:$0xff]
        %v687 = vld [vmem:[#allocation6 + $0x3a0] sm:$0xff]
        %v688 = vld [vmem:[#allocation6 + $0x3a8] sm:$0xff]
        %v689 = vld [vmem:[#allocation6 + $0x3b0] sm:$0xff]
        %v690 = vld [vmem:[#allocation6 + $0x3b8] sm:$0xff]
        %v691 = vld [vmem:[#allocation6 + $0x3c0] sm:$0xff]
        %v692 = vld [vmem:[#allocation6 + $0x3c8] sm:$0xff]
        %v693 = vld [vmem:[#allocation6 + $0x3d0] sm:$0xff]
        %v694 = vld [vmem:[#allocation6 + $0x3d8] sm:$0xff]
        %v695 = vld [vmem:[#allocation6 + $0x3e0] sm:$0xff]
        %v696 = vld [vmem:[#allocation6 + $0x3e8] sm:$0xff]
        %v697 = vld [vmem:[#allocation6 + $0x3f0] sm:$0xff]
        %v698 = vld [vmem:[#allocation6 + $0x3f8] sm:$0xff]
        %s699 = sld [smem:[#allocation2]]
        %v700 = vstv %s699
        %701 = vmatprep.subr.mxu0 %v572
        %702 = vmatpush1.msra.mxu0 %v571
        %703 = vmatprep.subr.mxu0 %v574
        %704 = vmatpush1.msra.mxu0 %v573
        %705 = vmatprep.subr.mxu0 %v576
        %706 = vmatpush1.msra.mxu0 %v575
        %707 = vmatprep.subr.mxu0 %v578
        %708 = vmatpush1.msra.mxu0 %v577
        %709 = vmatprep.subr.mxu0 %v580
        %710 = vmatpush1.msra.mxu0 %v579
        %711 = vmatprep.subr.mxu0 %v582
        %712 = vmatpush1.msra.mxu0 %v581
        %713 = vmatprep.subr.mxu0 %v584
        %714 = vmatpush1.msra.mxu0 %v583
        %715 = vmatprep.subr.mxu0 %v586
        %716 = vmatpush1.msra.mxu0 %v585
        %717 = vmatprep.subr.mxu0 %v588
        %718 = vmatpush1.msra.mxu0 %v587
        %719 = vmatprep.subr.mxu0 %v590
        %720 = vmatpush1.msra.mxu0 %v589
        %721 = vmatprep.subr.mxu0 %v592
        %722 = vmatpush1.msra.mxu0 %v591
        %723 = vmatprep.subr.mxu0 %v594
        %724 = vmatpush1.msra.mxu0 %v593
        %725 = vmatprep.subr.mxu0 %v596
        %726 = vmatpush1.msra.mxu0 %v595
        %727 = vmatprep.subr.mxu0 %v598
        %728 = vmatpush1.msra.mxu0 %v597
        %729 = vmatprep.subr.mxu0 %v600
        %730 = vmatpush1.msra.mxu0 %v599
        %731 = vmatprep.subr.mxu0 %v602
        %732 = vmatpush1.msra.mxu0 %v601
        %733 = vmatprep.subr.mxu0 %v604
        %734 = vmatpush1.msra.mxu0 %v603
        %735 = vmatprep.subr.mxu0 %v606
        %736 = vmatpush1.msra.mxu0 %v605
        %737 = vmatprep.subr.mxu0 %v608
        %738 = vmatpush1.msra.mxu0 %v607
        %739 = vmatprep.subr.mxu0 %v610
        %740 = vmatpush1.msra.mxu0 %v609
        %741 = vmatprep.subr.mxu0 %v612
        %742 = vmatpush1.msra.mxu0 %v611
        %743 = vmatprep.subr.mxu0 %v614
        %744 = vmatpush1.msra.mxu0 %v613
        %745 = vmatprep.subr.mxu0 %v616
        %746 = vmatpush1.msra.mxu0 %v615
        %747 = vmatprep.subr.mxu0 %v618
        %748 = vmatpush1.msra.mxu0 %v617
        %749 = vmatprep.subr.mxu0 %v620
        %750 = vmatpush1.msra.mxu0 %v619
        %751 = vmatprep.subr.mxu0 %v622
        %752 = vmatpush1.msra.mxu0 %v621
        %753 = vmatprep.subr.mxu0 %v624
        %754 = vmatpush1.msra.mxu0 %v623
        %755 = vmatprep.subr.mxu0 %v626
        %756 = vmatpush1.msra.mxu0 %v625
        %757 = vmatprep.subr.mxu0 %v628
        %758 = vmatpush1.msra.mxu0 %v627
        %759 = vmatprep.subr.mxu0 %v630
        %760 = vmatpush1.msra.mxu0 %v629
        %761 = vmatprep.subr.mxu0 %v632
        %762 = vmatpush1.msra.mxu0 %v631
        %763 = vmatprep.subr.mxu0 %v634
        %764 = vmatpush1.msra.mxu0 %v633
        %765 = vmatprep.mubr.f32.mxu0 %v552
        %766 = vmatmul.mubr.f32.gmra.mrb[0].mxu0 %v551
        %v767 = vpop.f32.mrb[0].mxu0
        %v768 = vadd.f32 %v700, %v767
        %v769 = vpop.f32.mrb[0].mxu0
        %v770 = vadd.f32 %v700, %v769
        %771 = vdwg.mxu0
        %772 = vmatprep.subr.mxu0 %v636
        %773 = vmatpush1.msra.mxu0 %v635
        %774 = vmatprep.subr.mxu0 %v638
        %775 = vmatpush1.msra.mxu0 %v637
        %776 = vmatprep.subr.mxu0 %v640
        %777 = vmatpush1.msra.mxu0 %v639
        %778 = vmatprep.subr.mxu0 %v642
        %779 = vmatpush1.msra.mxu0 %v641
        %780 = vmatprep.subr.mxu0 %v644
        %781 = vmatpush1.msra.mxu0 %v643
        %782 = vmatprep.subr.mxu0 %v646
        %783 = vmatpush1.msra.mxu0 %v645
        %784 = vmatprep.subr.mxu0 %v648
        %785 = vmatpush1.msra.mxu0 %v647
        %786 = vmatprep.subr.mxu0 %v650
        %787 = vmatpush1.msra.mxu0 %v649
        %788 = vmatprep.subr.mxu0 %v652
        %789 = vmatpush1.msra.mxu0 %v651
        %790 = vmatprep.subr.mxu0 %v654
        %791 = vmatpush1.msra.mxu0 %v653
        %792 = vmatprep.subr.mxu0 %v656
        %793 = vmatpush1.msra.mxu0 %v655
        %794 = vmatprep.subr.mxu0 %v658
        %795 = vmatpush1.msra.mxu0 %v657
        %796 = vmatprep.subr.mxu0 %v660
        %797 = vmatpush1.msra.mxu0 %v659
        %798 = vmatprep.subr.mxu0 %v662
        %799 = vmatpush1.msra.mxu0 %v661
        %800 = vmatprep.subr.mxu0 %v664
        %801 = vmatpush1.msra.mxu0 %v663
        %802 = vmatprep.subr.mxu0 %v666
        %803 = vmatpush1.msra.mxu0 %v665
        %804 = vmatprep.subr.mxu0 %v668
        %805 = vmatpush1.msra.mxu0 %v667
        %806 = vmatprep.subr.mxu0 %v670
        %807 = vmatpush1.msra.mxu0 %v669
        %808 = vmatprep.subr.mxu0 %v672
        %809 = vmatpush1.msra.mxu0 %v671
        %810 = vmatprep.subr.mxu0 %v674
        %811 = vmatpush1.msra.mxu0 %v673
        %812 = vmatprep.subr.mxu0 %v676
        %813 = vmatpush1.msra.mxu0 %v675
        %814 = vmatprep.subr.mxu0 %v678
        %815 = vmatpush1.msra.mxu0 %v677
        %816 = vmatprep.subr.mxu0 %v680
        %817 = vmatpush1.msra.mxu0 %v679
        %818 = vmatprep.subr.mxu0 %v682
        %819 = vmatpush1.msra.mxu0 %v681
        %820 = vmatprep.subr.mxu0 %v684
        %821 = vmatpush1.msra.mxu0 %v683
        %822 = vmatprep.subr.mxu0 %v686
        %823 = vmatpush1.msra.mxu0 %v685
        %824 = vmatprep.subr.mxu0 %v688
        %825 = vmatpush1.msra.mxu0 %v687
        %826 = vmatprep.subr.mxu0 %v690
        %827 = vmatpush1.msra.mxu0 %v689
        %828 = vmatprep.subr.mxu0 %v692
        %829 = vmatpush1.msra.mxu0 %v691
        %830 = vmatprep.subr.mxu0 %v694
        %831 = vmatpush1.msra.mxu0 %v693
        %832 = vmatprep.subr.mxu0 %v696
        %833 = vmatpush1.msra.mxu0 %v695
        %834 = vmatprep.subr.mxu0 %v698
        %835 = vmatpush1.msra.mxu0 %v697
        %836 = vmatprep.mubr.f32.mxu0 %v570
        %837 = vmatmul.mubr.f32.gmra.mrb[0].mxu0 %v561
        %v838 = vpop.f32.mrb[0].mxu0
        %v839 = vadd.f32 %v768, %v838
        %v840 = vpop.f32.mrb[0].mxu0
        %v841 = vadd.f32 %v770, %v840
        %842 = vdwg.mxu0
        %v843 = vxor.u32 %v839, 2147483648
        %v844 = vxor.u32 %v841, 2147483648
        %v845 = vmul.f32 %v843, 1.442695
        %v846 = vpow.pop %v845
        %v847 = vmul.f32 %v844, 1.442695
        %v848 = vpow.pop %v847
        %v849 = vadd.f32 %v846, 1.0
        %v850 = vadd.f32 %v848, 1.0
        %v851 = vrcp.pop %v849
        %v852 = vmul.f32 1.0, %v851
        %v853 = vrcp.pop %v850
        %v854 = vmul.f32 1.0, %v853
        %v855 = vlaneseq
        %v856 = vshrl.u32 %v855, 7
        %v857 = vsub.s32 0, %v856
        %v858 = vrot.slane %v532, %v857
        %860 = vbcast.lane.b32.xlu0 %v858, 256
        %v861 = vpop.permute.xlu0 %860
        %s863 = sor.u32 256, 8
        %864 = vbcast.lane.b32.xlu0 %v858, %s863
        %v865 = vpop.permute.xlu0 %864
        %s867 = sor.u32 256, 16
        %868 = vbcast.lane.b32.xlu0 %v858, %s867
        %v869 = vpop.permute.xlu0 %868
        %s871 = sor.u32 256, 24
        %872 = vbcast.lane.b32.xlu0 %v858, %s871
        %v873 = vpop.permute.xlu0 %872
        %v874 = vadd.f32 %v861, 1.0
        %v875 = vadd.f32 %v865, 1.0
        %v876 = vadd.f32 %v869, 1.0
        %v877 = vadd.f32 %v873, 1.0
        %v878 = vlaneseq
        %v879 = vshrl.u32 %v878, 7
        %v880 = vsub.s32 0, %v879
        %v881 = vrot.slane %v852, %v880
        %v882 = vlaneseq
        %v883 = vshrl.u32 %v882, 7
        %v884 = vsub.s32 0, %v883
        %v885 = vrot.slane %v854, %v884
        %v886 = vadd.f32 %v874, %v881
        %v887 = vadd.f32 %v874, %v885
        %v888 = vadd.f32 %v875, %v881
        %v889 = vadd.f32 %v875, %v885
        %v890 = vadd.f32 %v876, %v881
        %v891 = vadd.f32 %v876, %v885
        %v892 = vadd.f32 %v877, %v881
        %v893 = vadd.f32 %v877, %v885
        %v894 = vmul.f32 %v313, %v886
        %v895 = vmul.f32 %v314, %v887
        %v896 = vmul.f32 %v315, %v888
        %v897 = vmul.f32 %v316, %v889
        %v898 = vmul.f32 %v317, %v890
        %v899 = vmul.f32 %v318, %v891
        %v900 = vmul.f32 %v319, %v892
        %v901 = vmul.f32 %v320, %v893
        %902 = vst [vmem:[%s312] sm:$0xff] %v894
        %903 = vst [vmem:[%s312 + $0x8] sm:$0xff] %v895
        %904 = vst [vmem:[%s312 + $0x10] sm:$0xff] %v896
        %905 = vst [vmem:[%s312 + $0x18] sm:$0xff] %v897
        %906 = vst [vmem:[%s312 + $0x20] sm:$0xff] %v898
        %907 = vst [vmem:[%s312 + $0x28] sm:$0xff] %v899
        %908 = vst [vmem:[%s312 + $0x30] sm:$0xff] %v900
        %909 = vst [vmem:[%s312 + $0x38] sm:$0xff] %v901
        %s910 = sand.u32 %s186, 1
        %s911 = scalar_lea.sflag [#allocation5], %s910
        %s912 = sand.u32 %s186, 1
        %s913 = smul.addr %s912, 64
        %s914 = scalar_lea.vmem [#allocation8], %s913
        // Predicated region
        $region57: #{tpu_custom_call.1} parent=47 // pred_check
          %p915 = pneg %p196
        $region58: #{tpu_custom_call.1} parent=47 // pred_check_branch
          %917 = sbr.rel (%p915) target = $region60
        $region59: #{tpu_custom_call.1} parent=47 // pred_region
          %s919 = ssub.s32 1024, 1024
          %920 = vsyncadd %s911, %s919
          %s921 = smul.addr %s26, 8
          %s922 = smul.addr %s921, 128
          %s923 = scalar_lea.hbm %s7, %s922
          %s924 = sshll.u32 %s914, 4
          %s925 = int_to_ptr.vmem [resolvable:$true] %s924
          %930 = dma.vmem_to_hbm [thread:$0]  %s925, 1024, %s923, %s911, 256, 256, 16
        $region60: #{tpu_custom_call.1} parent=47 // pred_fallthru
          _
      $region48: #{tpu_custom_call.1} parent=5 // pred_fallthru
        _
      %p931 = scmp.le.s32.totalorder 2, %s21
      // Predicated region
      $region61: #{tpu_custom_call.1} parent=5 // pred_check
        %p932 = pneg %p931
      $region62: #{tpu_custom_call.1} parent=5 // pred_check_branch
        %934 = sbr.rel (%p932) target = $region64
      $region63: #{tpu_custom_call.1} parent=5 // pred_region
        %s935 = ssub.s32 %s21, 2
        // Predicated region
        $region65: #{tpu_custom_call.1} parent=63 // pred_check
          %p936 = pneg %p202
        $region66: #{tpu_custom_call.1} parent=63 // pred_check_branch
          %938 = sbr.rel (%p936) target = $region68
        $region67: #{tpu_custom_call.1} parent=63 // pred_region
          %s939 = sand.u32 %s187, 1
          %s940 = scalar_lea.sflag [#allocation5], %s939
          %s941 = sand.u32 %s187, 1
          %s942 = smul.addr %s941, 64
          %s943 = scalar_lea.vmem [#allocation8], %s942
          %944 = dma.done %s940, 1024
        $region68: #{tpu_custom_call.1} parent=63 // pred_fallthru
          _
      $region64: #{tpu_custom_call.1} parent=5 // pred_fallthru
        _
    $region6: #{tpu_custom_call.1} parent=1 // loop_footer
      %s25 = sadd.s32 1, %s21
    $region7: #{tpu_custom_call.1} parent=1 // loop_footer_branch
      %20 = sbr.rel target = $region3
    $region8: #{tpu_custom_call.1} parent=1 // loop_exit
      _
    %945 = vsyncpa [#allocation4], 1
    %s946 = scalar_lea.sflag [#allocation4], 1
    %947 = vsyncpa %s946, 1
    %948 = vsyncpa [#allocation7], 1
    %949 = vsyncpa [#allocation5], 1
    %s950 = scalar_lea.sflag [#allocation5], 1
    %951 = vsyncpa %s950, 1

</llo_original>
